<compile_context>
chip_gen: v6e
topology: v6e:2x2x1
jax: 0.10.0
libtpu: 0.0.40
codegen_flags: <defaults>
</compile_context>

<pallas_src>
import functools
import math

import jax
import jax.numpy as jnp
import numpy as np
from jax.experimental import pallas as pl
from jax.experimental.pallas import tpu as pltpu


def _round_up(x, m):
    return (x + m - 1) // m * m


# --------------------------------------------------------------------------
# Pallas kernel 1: tiled bf16 MXU matmul, f32 accumulation directly in o_ref
# --------------------------------------------------------------------------
def _matmul_kernel(x_ref, w_ref, o_ref):
    @pl.when(pl.program_id(2) == 0)
    def _():
        o_ref[...] = jnp.zeros_like(o_ref)

    o_ref[...] += jnp.dot(x_ref[...], w_ref[...],
                          preferred_element_type=jnp.float32)


def pallas_matmul(x, w, tm=512, tn=1024, tk=1024):
    """[M,K] @ [K,N] -> [M,N] f32.  bf16 operands, f32 accumulate, tiled grid."""
    M, K = x.shape
    K2, N = w.shape
    assert K == K2
    x = x.astype(jnp.bfloat16)
    w = w.astype(jnp.bfloat16)

    # bf16 packs 16 rows per sublane group -> round M tiles to 16.
    # tn default is large enough to cover the full output width at real CLIP
    # dims (512/768) so each activation tile is streamed exactly once.
    tm = min(tm, _round_up(M, 16))
    tn = min(tn, _round_up(N, 128))
    tk = min(tk, _round_up(K, 128))
    Mp, Kp, Np_ = _round_up(M, tm), _round_up(K, tk), _round_up(N, tn)
    if (Mp, Kp) != (M, K):
        x = jnp.pad(x, ((0, Mp - M), (0, Kp - K)))
    if (Kp, Np_) != (K, N):
        w = jnp.pad(w, ((0, Kp - K), (0, Np_ - N)))

    grid = (Mp // tm, Np_ // tn, Kp // tk)
    out = pl.pallas_call(
        _matmul_kernel,
        out_shape=jax.ShapeDtypeStruct((Mp, Np_), jnp.float32),
        grid_spec=pltpu.PrefetchScalarGridSpec(
            num_scalar_prefetch=0,
            grid=grid,
            in_specs=[pl.BlockSpec((tm, tk), lambda i, j, k: (i, k)),
                      pl.BlockSpec((tk, tn), lambda i, j, k: (k, j))],
            out_specs=pl.BlockSpec((tm, tn), lambda i, j, k: (i, j))),
        compiler_params=pltpu.CompilerParams(
            dimension_semantics=("parallel", "parallel", "arbitrary"),
            vmem_limit_bytes=48 * 1024 * 1024),
        cost_estimate=pl.CostEstimate(
            flops=2 * Mp * Np_ * Kp,
            transcendentals=0,
            bytes_accessed=Mp * Kp * 2 + Kp * Np_ * 2 + Mp * Np_ * 4),
    )(x, w)
    return out[:M, :N]


# --------------------------------------------------------------------------
# Pallas kernel 2: masked meanP video pooling + re-norm (row-tiled, parallel)
#   visual_output [B,T,D], video_mask [B,T] -> video_features [B,D]
# --------------------------------------------------------------------------
def _video_pool_kernel(vis_ref, mask_ref, out_ref):
    vis = vis_ref[...].astype(jnp.float32)       # [tb, T, D]
    mask = mask_ref[...].astype(jnp.float32)     # [tb, T]

    # per-frame L2 norm (rsqrt-multiply: EUP slot, co-issues with VPU)
    v_inv = jax.lax.rsqrt(jnp.sum(vis * vis, axis=-1, keepdims=True))
    vis_n = vis * v_inv

    mask_un = mask[..., None]                                    # [tb,T,1]
    mask_sum = jnp.sum(mask_un, axis=1)                          # [tb,1]
    mask_sum = jnp.where(mask_sum == 0.0, 1.0, mask_sum)
    pooled = jnp.sum(vis_n * mask_un, axis=1) / mask_sum         # exact divide
    p_inv = jax.lax.rsqrt(jnp.sum(pooled * pooled, axis=-1, keepdims=True))
    out_ref[...] = pooled * p_inv


def pallas_video_pool(vis, mask, tb=128):
    B, T, D = vis.shape
    tb = min(tb, B)
    if B % tb != 0 or (tb != B and tb % 8 != 0):
        tb = B
    grid = (B // tb,)
    return pl.pallas_call(
        _video_pool_kernel,
        out_shape=jax.ShapeDtypeStruct((B, D), jnp.float32),
        grid_spec=pltpu.PrefetchScalarGridSpec(
            num_scalar_prefetch=0,
            grid=grid,
            in_specs=[pl.BlockSpec((tb, T, D), lambda i: (i, 0, 0)),
                      pl.BlockSpec((tb, T), lambda i: (i, 0))],
            out_specs=pl.BlockSpec((tb, D), lambda i: (i, 0))),
        compiler_params=pltpu.CompilerParams(
            dimension_semantics=("parallel",)),
    )(vis.astype(jnp.float32), mask.astype(jnp.float32))


# --------------------------------------------------------------------------
# Pallas kernel 3: row-tiled similarity + symmetric CrossEn loss
#   text norm per row tile, sim = scale * text @ video.T (D-contraction),
#   diag via matched-row dot, global column-LSE as running (max, sumexp).
# --------------------------------------------------------------------------
def _sim_loss_kernel(seq_ref, vall_ref, vrows_ref, scale_ref, loss_ref,
                     mcol_ref, lcol_ref, racc_ref, dacc_ref, *, inv_b):
    i = pl.program_id(0)

    @pl.when(i == 0)
    def _():
        mcol_ref[...] = jnp.full_like(mcol_ref, -jnp.inf)
        lcol_ref[...] = jnp.zeros_like(lcol_ref)
        racc_ref[...] = jnp.zeros_like(racc_ref)
        dacc_ref[...] = jnp.zeros_like(dacc_ref)

    # text_features = sequence_output / ||sequence_output|| for this row tile
    seq = seq_ref[...].astype(jnp.float32)                       # [tq, D]
    t_inv = jax.lax.rsqrt(jnp.sum(seq * seq, axis=-1, keepdims=True))
    text = seq * t_inv

    vall = vall_ref[...].astype(jnp.float32)                     # [B, D] (resident)
    vrows = vrows_ref[...].astype(jnp.float32)                   # [tq, D]
    scale = scale_ref[0, 0]

    # logits: contract D with D directly (no transpose materialized)
    sim = scale * jax.lax.dot_general(
        text, vall, dimension_numbers=(((1,), (1,)), ((), ())),
        preferred_element_type=jnp.float32)                      # [tq, B]

    # row-wise logsumexp (local to this row tile)
    mx_r = jnp.max(sim, axis=-1, keepdims=True)
    lse_r = jnp.log(jnp.sum(jnp.exp(sim - mx_r), axis=-1, keepdims=True)) + mx_r
    racc_ref[...] += jnp.sum(lse_r)

    # diagonal via matched-row dot: O(tq*D), no eye mask / B^2 masked reduce
    dacc_ref[...] += scale * jnp.sum(text * vrows)

    # global column-wise logsumexp as running (max, sumexp) across row tiles
    m_old = mcol_ref[...]                                        # [1, B]
    m_new = jnp.maximum(m_old, jnp.max(sim, axis=0, keepdims=True))
    lcol_ref[...] = (lcol_ref[...] * jnp.exp(m_old - m_new)
                     + jnp.sum(jnp.exp(sim - m_new), axis=0, keepdims=True))
    mcol_ref[...] = m_new

    @pl.when(i == pl.num_programs(0) - 1)
    def _():
        col_lse_sum = jnp.sum(jnp.log(lcol_ref[...]) + mcol_ref[...])  # scalar
        diag = dacc_ref[...]                                           # (1,1)
        loss1 = (racc_ref[...] - diag) * inv_b
        loss2 = (col_lse_sum - diag) * inv_b
        loss_ref[...] = (loss1 + loss2) * 0.5


def clip4clip_head(seq_out, vis_out, video_mask, logit_scale_exp,
                   tq=128, tb=128):
    B, D = seq_out.shape

    # 1) masked meanP pooling + re-norm of video features (parallel row grid)
    vfeat = pallas_video_pool(vis_out, video_mask, tb=tb)        # [B, D] f32

    # 2) row-tiled sim + symmetric CrossEn with global column logsumexp
    tq = min(tq, B)
    if B % tq != 0 or (tq != B and tq % 8 != 0):
        tq = B
    grid = (B // tq,)
    scale = jnp.asarray(logit_scale_exp, jnp.float32).reshape(1, 1)
    kernel = functools.partial(_sim_loss_kernel, inv_b=1.0 / B)
    loss = pl.pallas_call(
        kernel,
        out_shape=jax.ShapeDtypeStruct((1, 1), jnp.float32),
        grid_spec=pltpu.PrefetchScalarGridSpec(
            num_scalar_prefetch=0,
            grid=grid,
            in_specs=[
                pl.BlockSpec((tq, D), lambda i: (i, 0)),     # text rows
                pl.BlockSpec((B, D), lambda i: (0, 0)),      # all video feats (resident)
                pl.BlockSpec((tq, D), lambda i: (i, 0)),     # matching video rows (diag)
                pl.BlockSpec((1, 1), lambda i: (0, 0)),      # logit scale
            ],
            out_specs=pl.BlockSpec((1, 1), lambda i: (0, 0)),
            scratch_shapes=[pltpu.VMEM((1, B), jnp.float32),   # running col max
                            pltpu.VMEM((1, B), jnp.float32),   # running col sumexp
                            pltpu.VMEM((1, 1), jnp.float32),   # sum of row lse
                            pltpu.VMEM((1, 1), jnp.float32)]), # diag sum
        compiler_params=pltpu.CompilerParams(
            dimension_semantics=("arbitrary",)),
    )(seq_out.astype(jnp.float32), vfeat, vfeat, scale)
    return loss[0, 0]


# --------------------------------------------------------------------------
# Synthetic CLIP encoders (deterministic weights; projections run in Pallas)
# --------------------------------------------------------------------------
EMBED_DIM = 128      # stand-in for 512
TXT_WIDTH = 128      # stand-in for transformer_width=512
VOCAB = 512          # stand-in for 49408
PATCH = 8            # stand-in for vision_patch_size=32


def init_params():
    k = jax.random.PRNGKey(0)
    k_tok, k_pos, k_txt, k_patch = jax.random.split(k, 4)
    return {
        "tok_emb": 0.02 * jax.random.normal(k_tok, (VOCAB, TXT_WIDTH), jnp.float32),
        "pos_emb": 0.01 * jax.random.normal(k_pos, (8, TXT_WIDTH), jnp.float32),
        "w_text": 0.05 * jax.random.normal(k_txt, (TXT_WIDTH, EMBED_DIM), jnp.float32),
        "w_patch": 0.05 * jax.random.normal(k_patch, (3 * PATCH * PATCH, EMBED_DIM), jnp.float32),
        "logit_scale": jnp.asarray(math.log(1.0 / 0.07), jnp.float32),
    }


def encode_text(params, text_tokens):
    # [B, L] -> [B, EMBED_DIM]
    B, L = text_tokens.shape
    x = params["tok_emb"][text_tokens] + params["pos_emb"][None, :L, :]
    x = jnp.mean(x, axis=1)                                   # glue pooling
    return pallas_matmul(x, params["w_text"])                 # tiled bf16 MXU matmul


def encode_image(params, video):
    # [B, T, 3, H, W] -> [B, T, EMBED_DIM]
    # The stand-in image encoder is a pure linear patch projection, so the
    # per-image patch-mean commutes with it: pool the raw patch pixels first
    # (one cheap reduction, no 6-D patch-major repack) and run a single
    # [BT, K] @ [K, D] MXU matmul.
    # TODO(synk): not valid for a real ViT (transformer sits between patch
    # embed and pooling) - there, fold the patch axis into the matmul grid
    # with the K axis innermost so the weight tile stays resident.
    B, T, C, H, W = video.shape
    P = PATCH
    nh, nw = H // P, W // P
    x = video.reshape(B * T, C, nh, P, nw, P).mean(axis=(2, 4))  # [BT, C, P, P]
    x = x.reshape(B * T, C * P * P)
    feat = pallas_matmul(x, params["w_patch"])                   # [BT, EMBED_DIM]
    return feat.reshape(B, T, EMBED_DIM)


def clip4clip_forward(params, text_input, video, video_mask):
    text_input = text_input.reshape(-1, text_input.shape[-1])
    sequence_output = encode_text(params, text_input)         # [B, D] float32
    visual_output = encode_image(params, video)               # [B, T, D] float32
    logit_scale_exp = jnp.exp(params["logit_scale"])
    return clip4clip_head(sequence_output, visual_output, video_mask, logit_scale_exp)


# --------------------------------------------------------------------------
# Pure-JAX reference for the head (sanity check of kernel semantics)
# --------------------------------------------------------------------------
def _head_reference(seq, vis, mask, scale):
    text_feat = seq / jnp.linalg.norm(seq, axis=-1, keepdims=True)
    vis_n = vis / jnp.linalg.norm(vis, axis=-1, keepdims=True)
    mask_un = mask.astype(jnp.float32)[..., None]
    msum = jnp.sum(mask_un, axis=1)
    msum = jnp.where(msum == 0.0, 1.0, msum)
    pooled = jnp.sum(vis_n * mask_un, axis=1) / msum
    video_feat = pooled / jnp.linalg.norm(pooled, axis=-1, keepdims=True)
    sim = scale * (text_feat @ video_feat.T)

    def cross_en(m):
        logpt = jax.nn.log_softmax(m, axis=-1)
        return -jnp.mean(jnp.diag(logpt))

    return 0.5 * (cross_en(sim) + cross_en(sim.T))


if __name__ == "__main__":
    B, L, T, H, W = 8, 8, 8, 16, 16

    params = init_params()
    key = jax.random.PRNGKey(0)
    k_txt, k_vid = jax.random.split(key)

    text_input = jax.random.randint(k_txt, (B, L), 0, VOCAB, dtype=jnp.int32)
    video = jax.random.normal(k_vid, (B, T, 3, H, W), jnp.float32)
    lengths = jnp.arange(T, 0, -1)                              # [8,7,...,1]
    video_mask = (jnp.arange(T)[None, :] < lengths[:B, None]).astype(jnp.float32)

    loss = clip4clip_forward(params, text_input, video, video_mask)
    loss = jax.block_until_ready(loss)

    # sanity-check the Pallas head against a pure-JAX reference (same inputs)
    seq_ref = encode_text(params, text_input)
    vis_ref = encode_image(params, video)
    ref = _head_reference(seq_ref, vis_ref, video_mask, jnp.exp(params["logit_scale"]))
    np.testing.assert_allclose(np.asarray(loss), np.asarray(ref), rtol=1e-2, atol=1e-3)

    print("KERNEL_OK")
</pallas_src>

<mosaic_0001>
module attributes {stable_mosaic.version = 11 : i64} {
  func.func @_matmul_kernel(%arg0: i32, %arg1: i32, %arg2: i32, %arg3: memref<16x128xbf16, #tpu.memory_space<vmem>>, %arg4: memref<128x128xbf16, #tpu.memory_space<vmem>>, %arg5: memref<16x128xf32, #tpu.memory_space<vmem>>) attributes {dimension_semantics = [#tpu.dimension_semantics<parallel>, #tpu.dimension_semantics<parallel>, #tpu.dimension_semantics<arbitrary>], iteration_bounds = array<i64: 1, 1, 1>, scalar_prefetch = 0 : i64, scratch_operands = 0 : i64, tpu.core_type = #tpu.core_type<tc>, window_params = [{transform_indices = @transform_0, window_bounds = array<i64: 16, 128>}, {transform_indices = @transform_1, window_bounds = array<i64: 128, 128>}, {transform_indices = @transform_2, window_bounds = array<i64: 16, 128>}]} {
    %c0_i32 = arith.constant 0 : i32
    %0 = arith.cmpi eq, %arg2, %c0_i32 : i32
    %1 = arith.extui %0 : i1 to i32
    %c0_i32_0 = arith.constant 0 : i32
    %2 = arith.cmpi ne, %1, %c0_i32_0 : i32
    scf.if %2 {
      %cst_8 = arith.constant 0.000000e+00 : f32
      %9 = vector.broadcast %cst_8 : f32 to vector<16x128xf32>
      %c0_9 = arith.constant 0 : index
      %c0_10 = arith.constant 0 : index
      %10 = vector.load %arg5[%c0_9, %c0_10] : memref<16x128xf32, #tpu.memory_space<vmem>>, vector<16x128xf32>
      tpu.vector_store %arg5[%c0_9, %c0_10], %9 {strides = array<i32>} : memref<16x128xf32, #tpu.memory_space<vmem>>, vector<16x128xf32>,
    } else {
    }
    %c0 = arith.constant 0 : index
    %c0_1 = arith.constant 0 : index
    %3 = vector.load %arg5[%c0, %c0_1] : memref<16x128xf32, #tpu.memory_space<vmem>>, vector<16x128xf32>
    %c0_2 = arith.constant 0 : index
    %c0_3 = arith.constant 0 : index
    %4 = vector.load %arg3[%c0_2, %c0_3] : memref<16x128xbf16, #tpu.memory_space<vmem>>, vector<16x128xbf16>
    %c0_4 = arith.constant 0 : index
    %c0_5 = arith.constant 0 : index
    %5 = vector.load %arg4[%c0_4, %c0_5] : memref<128x128xbf16, #tpu.memory_space<vmem>>, vector<128x128xbf16>
    %cst = arith.constant dense<0.000000e+00> : vector<16x128xf32>
    %6 = tpu.matmul %4, %5, %cst {dimension_numbers = #tpu.dot_dimension_numbers<[1], [0], [0], [1], [0, 0, 1, 1], [], []>} : vector<16x128xbf16>, vector<128x128xbf16>, vector<16x128xf32> -> vector<16x128xf32>
    %7 = arith.addf %3, %6 : vector<16x128xf32>
    %c0_6 = arith.constant 0 : index
    %c0_7 = arith.constant 0 : index
    %8 = vector.load %arg5[%c0_6, %c0_7] : memref<16x128xf32, #tpu.memory_space<vmem>>, vector<16x128xf32>
    tpu.vector_store %arg5[%c0_6, %c0_7], %7 {strides = array<i32>} : memref<16x128xf32, #tpu.memory_space<vmem>>, vector<16x128xf32>,
    return
  }
  func.func @transform_0(%arg0: i32, %arg1: i32, %arg2: i32) -> (i32, i32) {
    %c0_i32 = arith.constant 0 : i32
    return %arg0, %arg2 : i32, i32
  }
  func.func @transform_1(%arg0: i32, %arg1: i32, %arg2: i32) -> (i32, i32) {
    %c0_i32 = arith.constant 0 : i32
    return %arg2, %arg1 : i32, i32
  }
  func.func @transform_2(%arg0: i32, %arg1: i32, %arg2: i32) -> (i32, i32) {
    %c0_i32 = arith.constant 0 : i32
    return %arg0, %arg1 : i32, i32
  }
}

</mosaic_0001>

<llo_original>
// kernel: tpu_custom_call.1
$region0: #{tpu_custom_call.1}
  #allocation0 [shape = 'u32[]', space=smem, size = 0x4, offset = 0x4, fixed_abs, tag = 'smem constant byte address 0x4 - core index']
  #allocation1 [shape = 'u32[144,128]{1,0:T(1,128)}', space=vmem, size = 0x12000, scoped, tag = 'internal scratch']
  %s0 = inlined_call_operand.hbm [shape: bf16[16,128], index: 0, kind: input, shape index: {}]
  %s1 = inlined_call_operand.hbm [shape: bf16[128,128], index: 1, kind: input, shape index: {}]
  %s2 = inlined_call_operand.hbm [shape: f32[16,128], index: 2, kind: output, shape index: {}]
  %s3 = sld [smem:[#allocation0]]
  $region30: #{tpu_custom_call.1} parent=0
    _
  %s5 = ssub.s32 1, %s3
  %s6 = scalar_select 0, %s5, %s3
  $region1: #{tpu_custom_call.1} parent=0
    #allocation2 [shape = 'u8[4096]{0}', space=vmem, size = 0x1000, scoped, tag = 'input window, operand 0, single buffered']
    #allocation3 [shape = 's32[1]{0}', space=sflag, size = 0x4, scoped, tag = 'scoped memory for tpu_custom_call.1']
    #allocation4 [shape = 's32[1]{0}', space=sflag, size = 0x4, scoped, tag = 'scoped memory for tpu_custom_call.1']
    #allocation5 [shape = 'u8[32768]{0}', space=vmem, size = 0x8000, scoped, tag = 'input window, operand 1, single buffered']
    #allocation6 [shape = 's32[1]{0}', space=sflag, size = 0x4, scoped, tag = 'scoped memory for tpu_custom_call.1']
    #allocation7 [shape = 'u8[8192]{0}', space=vmem, size = 0x2000, scoped, tag = 'output window, operand 0, single buffered']
    %7 = vsyncpa [#allocation3], 0
    %8 = vsyncpa [#allocation6], 0
    %9 = vsyncpa [#allocation4], 0
    // Predicated region
    $region2: #{tpu_custom_call.1} parent=1 // pred_check
      _
    $region3: #{tpu_custom_call.1} parent=1 // pred_check_branch
      %11 = sbr.rel (0) target = $region5
    $region4: #{tpu_custom_call.1} parent=1 // pred_region
      %s13 = ssub.s32 128, 128
      %14 = vsyncadd [#allocation3], %s13
      %s15 = sshll.u32 [#allocation2], 4
      %s16 = int_to_ptr.vmem [resolvable:$true] %s15
      %21 = dma.hbm_to_vmem [thread:$0]  %s0, 128, %s16, [#allocation3], 64, 64, 4
    $region5: #{tpu_custom_call.1} parent=1 // pred_fallthru
      _
    // Predicated region
    $region6: #{tpu_custom_call.1} parent=1 // pred_check
      _
    $region7: #{tpu_custom_call.1} parent=1 // pred_check_branch
      %23 = sbr.rel (0) target = $region9
    $region8: #{tpu_custom_call.1} parent=1 // pred_region
      %s25 = ssub.s32 1024, 1024
      %26 = vsyncadd [#allocation6], %s25
      %s27 = sshll.u32 [#allocation5], 4
      %s28 = int_to_ptr.vmem [resolvable:$true] %s27
      %33 = dma.hbm_to_vmem [thread:$0]  %s1, 1024, %s28, [#allocation6], 64, 64, 4
    $region9: #{tpu_custom_call.1} parent=1 // pred_fallthru
      _
    // Predicated region
    $region10: #{tpu_custom_call.1} parent=1 // pred_check
      _
    $region11: #{tpu_custom_call.1} parent=1 // pred_check_branch
      %35 = sbr.rel (0) target = $region13
    $region12: #{tpu_custom_call.1} parent=1 // pred_region
      %36 = dma.done [#allocation3], 128
    $region13: #{tpu_custom_call.1} parent=1 // pred_fallthru
      _
    // Predicated region
    $region14: #{tpu_custom_call.1} parent=1 // pred_check
      _
    $region15: #{tpu_custom_call.1} parent=1 // pred_check_branch
      %38 = sbr.rel (0) target = $region17
    $region16: #{tpu_custom_call.1} parent=1 // pred_region
      %39 = dma.done [#allocation6], 1024
    $region17: #{tpu_custom_call.1} parent=1 // pred_fallthru
      _
    %p41 = scmp.eq.s32.totalorder 0, 0
    // Predicated region
    $region18: #{tpu_custom_call.1} parent=1 // pred_check
      %p42 = pneg %p41
    $region19: #{tpu_custom_call.1} parent=1 // pred_check_branch
      %44 = sbr.rel (%p42) target = $region21
    $region20: #{tpu_custom_call.1} parent=1 // pred_region
      %45 = vst [vmem:[#allocation7] sm:$0xff] 0.0
      %46 = vst [vmem:[#allocation7 + $0x8] sm:$0xff] 0.0
    $region21: #{tpu_custom_call.1} parent=1 // pred_fallthru
      _
    %v47 = vld [vmem:[#allocation7] sm:$0xff]
    %v48 = vld [vmem:[#allocation7 + $0x8] sm:$0xff]
    %v49 = vld [vmem:[#allocation2] sm:$0xf]
    %v50 = vld [vmem:[#allocation2 + $0x4] sm:$0xf]
    %v51 = vld [vmem:[#allocation5] sm:$0xf]
    %v52 = vld [vmem:[#allocation5 + $0x4] sm:$0xf]
    %v53 = vld [vmem:[#allocation5 + $0x8] sm:$0xf]
    %v54 = vld [vmem:[#allocation5 + $0xc] sm:$0xf]
    %v55 = vld [vmem:[#allocation5 + $0x10] sm:$0xf]
    %v56 = vld [vmem:[#allocation5 + $0x14] sm:$0xf]
    %v57 = vld [vmem:[#allocation5 + $0x18] sm:$0xf]
    %v58 = vld [vmem:[#allocation5 + $0x1c] sm:$0xf]
    %v59 = vld [vmem:[#allocation5 + $0x20] sm:$0xf]
    %v60 = vld [vmem:[#allocation5 + $0x24] sm:$0xf]
    %v61 = vld [vmem:[#allocation5 + $0x28] sm:$0xf]
    %v62 = vld [vmem:[#allocation5 + $0x2c] sm:$0xf]
    %v63 = vld [vmem:[#allocation5 + $0x30] sm:$0xf]
    %v64 = vld [vmem:[#allocation5 + $0x34] sm:$0xf]
    %v65 = vld [vmem:[#allocation5 + $0x38] sm:$0xf]
    %v66 = vld [vmem:[#allocation5 + $0x3c] sm:$0xf]
    %v69 = vunpack.c.l.b16 %v49
    %v70 = vunpack.c.l.b16 %v50
    %v71 = vpack.c.b16 %v70, %v69
    %v89 = vunpack.c.l.b16 %v51
    %v90 = vunpack.c.l.b16 %v52
    %v91 = vunpack.c.l.b16 %v53
    %v92 = vunpack.c.l.b16 %v54
    %v93 = vunpack.c.l.b16 %v55
    %v94 = vunpack.c.l.b16 %v56
    %v95 = vunpack.c.l.b16 %v57
    %v96 = vunpack.c.l.b16 %v58
    %v97 = vunpack.c.l.b16 %v59
    %v98 = vunpack.c.l.b16 %v60
    %v99 = vunpack.c.l.b16 %v61
    %v100 = vunpack.c.l.b16 %v62
    %v101 = vunpack.c.l.b16 %v63
    %v102 = vunpack.c.l.b16 %v64
    %v103 = vunpack.c.l.b16 %v65
    %v104 = vunpack.c.l.b16 %v66
    %v105 = vpack.c.b16 %v90, %v89
    %v106 = vpack.c.b16 %v92, %v91
    %v107 = vpack.c.b16 %v94, %v93
    %v108 = vpack.c.b16 %v96, %v95
    %v109 = vpack.c.b16 %v98, %v97
    %v110 = vpack.c.b16 %v100, %v99
    %v111 = vpack.c.b16 %v102, %v101
    %v112 = vpack.c.b16 %v104, %v103
    %121 = vmatprep.subr.bf16.mxu0 0
    %122 = vmatpush1.bf16.msra.mxu0 %v112
    %123 = vmatprep.subr.bf16.mxu0 0
    %124 = vmatpush1.bf16.msra.mxu0 %v111
    %125 = vmatprep.subr.bf16.mxu0 0
    %126 = vmatpush1.bf16.msra.mxu0 %v110
    %127 = vmatprep.subr.bf16.mxu0 0
    %128 = vmatpush1.bf16.msra.mxu0 %v109
    %129 = vmatprep.subr.bf16.mxu0 0
    %130 = vmatpush1.bf16.msra.mxu0 %v108
    %131 = vmatprep.subr.bf16.mxu0 0
    %132 = vmatpush1.bf16.msra.mxu0 %v107
    %133 = vmatprep.subr.bf16.mxu0 0
    %134 = vmatpush1.bf16.msra.mxu0 %v106
    %135 = vmatprep.subr.bf16.mxu0 0
    %136 = vmatpush1.bf16.msra.mxu0 %v105
    %137 = vmatprep.subr.bf16.mxu0 0
    %138 = vmatpush2.bf16.msra.mxu0 0
    %139 = vmatprep.subr.bf16.mxu0 0
    %140 = vmatpush2.bf16.msra.mxu0 0
    %141 = vmatprep.subr.bf16.mxu0 0
    %142 = vmatpush2.bf16.msra.mxu0 0
    %143 = vmatprep.subr.bf16.mxu0 0
    %144 = vmatpush2.bf16.msra.mxu0 0
    %145 = vmatprep.subr.bf16.mxu0 0
    %146 = vmatpush2.bf16.msra.mxu0 0
    %147 = vmatprep.subr.bf16.mxu0 0
    %148 = vmatpush2.bf16.msra.mxu0 0
    %149 = vmatprep.subr.bf16.mxu0 0
    %150 = vmatpush2.bf16.msra.mxu0 0
    %151 = vmatprep.subr.bf16.mxu0 0
    %152 = vmatpush2.bf16.msra.mxu0 0
    %153 = vmatprep.mubr.bf16.mxu0 0
    %154 = vmatmul.mubr.bf16.gmra.mxu0 %v71
    %v155 = vpop.f32.mrf.mxu0
    %v156 = vadd.f32 0.0, %v155
    %v157 = vpop.f32.mrf.mxu0
    %v158 = vpop.f32.mrf.mxu0
    %v159 = vadd.f32 0.0, %v158
    %v160 = vpop.f32.mrf.mxu0
    %161 = vdwg.mxu0
    %v162 = vadd.f32 %v47, %v156
    %v163 = vadd.f32 %v48, %v159
    %164 = vst [vmem:[#allocation7] sm:$0xff] %v162
    %165 = vst [vmem:[#allocation7 + $0x8] sm:$0xff] %v163
    // Predicated region
    $region22: #{tpu_custom_call.1} parent=1 // pred_check
      _
    $region23: #{tpu_custom_call.1} parent=1 // pred_check_branch
      %167 = sbr.rel (0) target = $region25
    $region24: #{tpu_custom_call.1} parent=1 // pred_region
      %s169 = ssub.s32 256, 256
      %170 = vsyncadd [#allocation4], %s169
      %s171 = sshll.u32 [#allocation7], 4
      %s172 = int_to_ptr.vmem [resolvable:$true] %s171
      %177 = dma.vmem_to_hbm [thread:$0]  %s172, 256, %s2, [#allocation4], 128, 128, 8
    $region25: #{tpu_custom_call.1} parent=1 // pred_fallthru
      _
    // Predicated region
    $region26: #{tpu_custom_call.1} parent=1 // pred_check
      _
    $region27: #{tpu_custom_call.1} parent=1 // pred_check_branch
      %179 = sbr.rel (0) target = $region29
    $region28: #{tpu_custom_call.1} parent=1 // pred_region
      %180 = dma.done [#allocation4], 256
    $region29: #{tpu_custom_call.1} parent=1 // pred_fallthru
      _
    %181 = vsyncpa [#allocation3], 1
    %182 = vsyncpa [#allocation6], 1
    %183 = vsyncpa [#allocation4], 1

</llo_original>
